<compile_context>
chip_gen: v6e
topology: v6e:2x2x1
jax: 0.10.0
libtpu: 0.0.40
codegen_flags: <defaults>
</compile_context>

<pallas_src>
import jax
import jax.numpy as jnp
from jax.experimental import pallas as pl
from jax.experimental.pallas import tpu as pltpu


HIDDEN = 64
FUSED = 2 * HIDDEN             # 128 lanes: [actor hidden | value hidden]
_VMEM_BUDGET = 36 * 2**20      # pipeline-buffer budget (safe under v7x's 64 MiB)


def _round_up(n, m):
    return ((n + m - 1) // m) * m


def mlp_policy_kernel(x_ref, w1_ref, b1_ref, w2_ref, b2_ref, wv3_ref, bv3_ref,
                      out_ref):
    # Fused layer 1: lanes 0:63 = a_fc1, lanes 64:127 = v_fc1.
    # bf16 operands straight into the MXU, f32 accumulation.
    h = jnp.dot(x_ref[...], w1_ref[...], preferred_element_type=jnp.float32)
    h = jnp.tanh(h + b1_ref[...])
    # TODO(synk): on v6e/v7x the two tanh sweeps could run in bf16 if profiling shows
    # the EUP slot binding; kept f32 so the same kernel is safe on v5e (no bf16 EUP/VPU).

    # Fused layer 2 (block-diagonal): lanes 0:63 = a_fc2, lanes 64:127 = v_fc2.
    h = jnp.dot(h.astype(w2_ref.dtype), w2_ref[...],
                preferred_element_type=jnp.float32)
    h = jnp.tanh(h + b2_ref[...])
    # Now h[:, :64] = actor output, h[:, 64:] = tanh(v_fc2(tanh(v_fc1(x)))).

    # v_fc3 as VPU mul + lane reduce in f32 (wv3 row is zero in the actor lanes,
    # so they contribute nothing).  bv3 is a scalar from SMEM.
    v = jnp.sum(h * wv3_ref[...], axis=-1, keepdims=True) + bv3_ref[0, 0]

    # Lane-dense (tb, 128) output: lanes 0:63 actor, lanes 64:127 value (broadcast).
    lane = jax.lax.broadcasted_iota(jnp.int32, h.shape, dimension=1)
    out_ref[...] = jnp.where(lane < HIDDEN, h, v).astype(out_ref.dtype)


def _choose_tile(batch, num_inputs, block_b):
    """Pick the largest batch tile (rows) that fits the VMEM buffer budget."""
    block_b = max(8, _round_up(block_b, 8))
    tb = batch if batch <= block_b else block_b
    # v7x megacore: if one tile would cover a big batch, split into two tiles so the
    # "parallel" batch axis can shard across both TensorCores.
    if batch >= 256 and pl.cdiv(batch, tb) < 2:
        tb = _round_up(pl.cdiv(batch, 2), 8)

    def footprint(t):
        return (2 * t * num_inputs * 2                     # x tile (bf16), 2 bufs
                + 2 * t * FUSED * 4                        # out tile (f32), 2 bufs
                + 2 * (num_inputs + FUSED) * FUSED * 2     # W1 + W2 (bf16), 2 bufs
                + 2 * 3 * FUSED * 4                        # b1 / b2 / wv3 rows (f32)
                + 8)                                       # bv3 scalar (SMEM)

    while tb > 8 and footprint(tb) > _VMEM_BUDGET:
        tb = max(8, _round_up(tb // 2, 8))
    return tb, footprint(tb)


def mlp_policy_forward(inputs, states, masks, packed_params, *, block_b=1024):
    """inputs: (B, ...) flattened to (B, num_inputs). Returns (value, actor, states)."""
    B = inputs.shape[0]
    x = inputs.reshape(B, -1).astype(jnp.bfloat16)   # bf16 storage for the MXU
    num_inputs = x.shape[1]

    w1, b1, w2, b2, wv3_pad, bv3 = packed_params

    tb, fp = _choose_tile(B, num_inputs, block_b)
    n_blocks = pl.cdiv(B, tb)   # ragged last block handled by masked stores; no pad

    # Raise the scoped-VMEM limit so large tiles compile; cap under v7x physical.
    vmem_limit = int(min(48 << 20, max(32 << 20, fp + (8 << 20))))

    out = pl.pallas_call(
        mlp_policy_kernel,
        out_shape=jax.ShapeDtypeStruct((B, FUSED), jnp.float32),
        grid=(n_blocks,),
        in_specs=[
            pl.BlockSpec((tb, num_inputs), lambda i: (i, 0)),       # x tile (bf16)
            # Weights / biases are grid-invariant (constant index_map): fetched once,
            # kept resident across batch tiles.
            # TODO(synk): pipeline_mode=pl.Buffered(1) on these specs would halve their
            # VMEM footprint — only matters for image-sized num_inputs on v7x.
            pl.BlockSpec((num_inputs, FUSED), lambda i: (0, 0)),    # W1 (bf16)
            pl.BlockSpec((1, FUSED), lambda i: (0, 0)),             # b1 (f32)
            pl.BlockSpec((FUSED, FUSED), lambda i: (0, 0)),         # W2 (bf16)
            pl.BlockSpec((1, FUSED), lambda i: (0, 0)),             # b2 (f32)
            pl.BlockSpec((1, FUSED), lambda i: (0, 0)),             # wv3 row (f32)
            pl.BlockSpec(memory_space=pltpu.MemorySpace.SMEM),      # bv3 scalar
        ],
        out_specs=pl.BlockSpec((tb, FUSED), lambda i: (i, 0)),
        compiler_params=pltpu.CompilerParams(
            dimension_semantics=("parallel",),
            vmem_limit_bytes=vmem_limit,
        ),
    )(x, w1, b1, w2, b2, wv3_pad, bv3)

    # Thin slices of the fused slab; under jit they fuse into the consumer
    # (no extra HBM round-trip).  Downstream code may also consume `out` directly.
    actor = out[:, :HIDDEN]
    value = out[:, HIDDEN:HIDDEN + 1]
    # states passthrough — MLPPolicy has no recurrence (state_size == 1).
    return value, actor, states


def init_linear(key, in_features, out_features):
    """weights_init_mlp: W ~ N(0,1), rows normalized to unit L2 norm; bias = 0.
    Returns W pre-transposed to (in_features, out_features)."""
    w = jax.random.normal(key, (out_features, in_features), dtype=jnp.float32)
    w = w / jnp.sqrt(jnp.sum(w * w, axis=1, keepdims=True))
    b = jnp.zeros((1, out_features), dtype=jnp.float32)
    return w.T, b


def make_params(key, num_inputs):
    keys = jax.random.split(key, 5)
    wa1, ba1 = init_linear(keys[0], num_inputs, HIDDEN)   # a_fc1
    wa2, ba2 = init_linear(keys[1], HIDDEN, HIDDEN)       # a_fc2
    wv1, bv1 = init_linear(keys[2], num_inputs, HIDDEN)   # v_fc1
    wv2, bv2 = init_linear(keys[3], HIDDEN, HIDDEN)       # v_fc2
    wv3, bv3 = init_linear(keys[4], HIDDEN, 1)            # v_fc3
    # TODO(synk): self.dist (Categorical/DiagGaussian) is only used by
    # act()/evaluate_actions(), not forward(), so it is not implemented here.
    return (wv1, bv1, wv2, bv2, wv3, bv3, wa1, ba1, wa2, ba2)


def pack_params(params):
    """Fuse per-head weights into one 128-lane chain (actor lanes 0:63, value lanes
    64:127).  Matmul weights stored bf16 (f32 MXU accumulation in-kernel); biases
    and the v_fc3 row / bias stay f32 (value head kept in full precision)."""
    wv1, bv1, wv2, bv2, wv3, bv3, wa1, ba1, wa2, ba2 = params

    w1 = jnp.concatenate([wa1, wv1], axis=1).astype(jnp.bfloat16)   # (num_inputs, 128)
    b1 = jnp.concatenate([ba1, bv1], axis=1)                        # (1, 128) f32

    z = jnp.zeros((HIDDEN, HIDDEN), dtype=jnp.float32)
    w2 = jnp.concatenate(
        [jnp.concatenate([wa2, z], axis=1),
         jnp.concatenate([z, wv2], axis=1)], axis=0).astype(jnp.bfloat16)  # (128, 128)
    b2 = jnp.concatenate([ba2, bv2], axis=1)                        # (1, 128) f32

    wv3_pad = jnp.concatenate(
        [jnp.zeros((1, HIDDEN), dtype=jnp.float32), wv3.reshape(1, HIDDEN)],
        axis=1)                                                     # (1, 128) f32
    bv3_s = bv3.reshape(1, 1)                                       # SMEM scalar

    return (w1, b1, w2, b2, wv3_pad, bv3_s)


if __name__ == "__main__":
    key = jax.random.PRNGKey(0)
    k_in, k_param = jax.random.split(key)

    B, NUM_INPUTS = 8, 16
    inputs = jax.random.normal(k_in, (B, NUM_INPUTS), dtype=jnp.float32)
    states = jnp.zeros((B, 1), dtype=jnp.float32)   # state_size == 1
    masks = jnp.ones((B, 1), dtype=jnp.float32)

    params = make_params(k_param, NUM_INPUTS)
    packed = pack_params(params)

    fwd = jax.jit(mlp_policy_forward)
    value, actor, states_out = fwd(inputs, states, masks, packed)
    jax.block_until_ready((value, actor, states_out))

    # --- sanity checks ---
    wv1, bv1, wv2, bv2, wv3, bv3, wa1, ba1, wa2, ba2 = params

    # (a) exact f32 reference (original PyTorch module semantics).
    h = jnp.tanh(inputs @ wv1 + bv1)
    h = jnp.tanh(h @ wv2 + bv2)
    value_f32 = h @ wv3 + bv3
    a = jnp.tanh(inputs @ wa1 + ba1)
    actor_f32 = jnp.tanh(a @ wa2 + ba2)

    # (b) reference with the same bf16-operand / f32-accumulate quantization.
    def mm(x, w):
        return jnp.dot(x.astype(jnp.bfloat16), w.astype(jnp.bfloat16),
                       preferred_element_type=jnp.float32)
    hv = jnp.tanh(mm(inputs, wv1) + bv1)
    hv = jnp.tanh(mm(hv, wv2) + bv2)
    value_q = hv @ wv3 + bv3
    ha = jnp.tanh(mm(inputs, wa1) + ba1)
    actor_q = jnp.tanh(mm(ha, wa2) + ba2)

    assert value.shape == (B, 1) and actor.shape == (B, HIDDEN)
    assert states_out.shape == states.shape
    assert jnp.allclose(value, value_q, atol=2e-3)
    assert jnp.allclose(actor, actor_q, atol=2e-3)
    assert jnp.allclose(value, value_f32, atol=5e-2)
    assert jnp.allclose(actor, actor_f32, atol=5e-2)

    print("KERNEL_OK")
</pallas_src>

<mosaic_0001>
module attributes {stable_mosaic.version = 11 : i64} {
  func.func @mlp_policy_kernel(%arg0: i32, %arg1: memref<8x16xbf16, #tpu.memory_space<vmem>>, %arg2: memref<16x128xbf16, #tpu.memory_space<vmem>>, %arg3: memref<1x128xf32, #tpu.memory_space<vmem>>, %arg4: memref<128x128xbf16, #tpu.memory_space<vmem>>, %arg5: memref<1x128xf32, #tpu.memory_space<vmem>>, %arg6: memref<1x128xf32, #tpu.memory_space<vmem>>, %arg7: memref<1x1xf32, #tpu.memory_space<smem>>, %arg8: memref<8x128xf32, #tpu.memory_space<vmem>>) attributes {dimension_semantics = [#tpu.dimension_semantics<parallel>], iteration_bounds = array<i64: 1>, scalar_prefetch = 0 : i64, scratch_operands = 0 : i64, tpu.core_type = #tpu.core_type<tc>, window_params = [{transform_indices = @transform_0, window_bounds = array<i64: 8, 16>}, {pipeline_mode = #tpu.pipeline_mode<synchronous>, transform_indices = @transform_1, window_bounds = array<i64: 16, 128>}, {pipeline_mode = #tpu.pipeline_mode<synchronous>, transform_indices = @transform_2, window_bounds = array<i64: 1, 128>}, {pipeline_mode = #tpu.pipeline_mode<synchronous>, transform_indices = @transform_3, window_bounds = array<i64: 128, 128>}, {pipeline_mode = #tpu.pipeline_mode<synchronous>, transform_indices = @transform_4, window_bounds = array<i64: 1, 128>}, {pipeline_mode = #tpu.pipeline_mode<synchronous>, transform_indices = @transform_5, window_bounds = array<i64: 1, 128>}, {transform_indices = @transform_6, window_bounds = array<i64: 1, 1>}, {transform_indices = @transform_7, window_bounds = array<i64: 8, 128>}]} {
    %c0 = arith.constant 0 : index
    %c0_0 = arith.constant 0 : index
    %0 = vector.load %arg1[%c0, %c0_0] : memref<8x16xbf16, #tpu.memory_space<vmem>>, vector<8x16xbf16>
    %c0_1 = arith.constant 0 : index
    %c0_2 = arith.constant 0 : index
    %1 = vector.load %arg2[%c0_1, %c0_2] : memref<16x128xbf16, #tpu.memory_space<vmem>>, vector<16x128xbf16>
    %cst = arith.constant dense<0.000000e+00> : vector<8x128xf32>
    %2 = tpu.matmul %0, %1, %cst {dimension_numbers = #tpu.dot_dimension_numbers<[1], [0], [0], [1], [0, 0, 1, 1], [], []>} : vector<8x16xbf16>, vector<16x128xbf16>, vector<8x128xf32> -> vector<8x128xf32>
    %c0_3 = arith.constant 0 : index
    %c0_4 = arith.constant 0 : index
    %3 = vector.load %arg3[%c0_3, %c0_4] : memref<1x128xf32, #tpu.memory_space<vmem>>, vector<1x128xf32>
    %4 = vector.broadcast %3 : vector<1x128xf32> to vector<8x128xf32>
    %5 = arith.addf %2, %4 : vector<8x128xf32>
    %6 = math.tanh %5 : vector<8x128xf32>
    %7 = arith.truncf %6 : vector<8x128xf32> to vector<8x128xbf16>
    %c0_5 = arith.constant 0 : index
    %c0_6 = arith.constant 0 : index
    %8 = vector.load %arg4[%c0_5, %c0_6] : memref<128x128xbf16, #tpu.memory_space<vmem>>, vector<128x128xbf16>
    %cst_7 = arith.constant dense<0.000000e+00> : vector<8x128xf32>
    %9 = tpu.matmul %7, %8, %cst_7 {dimension_numbers = #tpu.dot_dimension_numbers<[1], [0], [0], [1], [0, 0, 1, 1], [], []>} : vector<8x128xbf16>, vector<128x128xbf16>, vector<8x128xf32> -> vector<8x128xf32>
    %c0_8 = arith.constant 0 : index
    %c0_9 = arith.constant 0 : index
    %10 = vector.load %arg5[%c0_8, %c0_9] : memref<1x128xf32, #tpu.memory_space<vmem>>, vector<1x128xf32>
    %11 = vector.broadcast %10 : vector<1x128xf32> to vector<8x128xf32>
    %12 = arith.addf %9, %11 : vector<8x128xf32>
    %13 = math.tanh %12 : vector<8x128xf32>
    %c0_10 = arith.constant 0 : index
    %c0_11 = arith.constant 0 : index
    %14 = vector.load %arg6[%c0_10, %c0_11] : memref<1x128xf32, #tpu.memory_space<vmem>>, vector<1x128xf32>
    %15 = vector.broadcast %14 : vector<1x128xf32> to vector<8x128xf32>
    %16 = arith.mulf %13, %15 : vector<8x128xf32>
    %cst_12 = arith.constant dense<0.000000e+00> : vector<8xf32>
    %17 = vector.multi_reduction <add>, %16, %cst_12 [1] : vector<8x128xf32> to vector<8xf32>
    %18 = vector.shape_cast %17 : vector<8xf32> to vector<8x1xf32>
    %c0_13 = arith.constant 0 : index
    %c0_14 = arith.constant 0 : index
    %19 = memref.load %arg7[%c0_13, %c0_14] : memref<1x1xf32, #tpu.memory_space<smem>>
    %20 = vector.broadcast %19 : f32 to vector<8x1xf32>
    %21 = arith.addf %18, %20 : vector<8x1xf32>
    %22 = tpu.iota {dimensions = array<i32: 1>} : vector<8x128xi32>
    %c64_i32 = arith.constant 64 : i32
    %23 = vector.broadcast %c64_i32 : i32 to vector<8x128xi32>
    %24 = arith.cmpi slt, %22, %23 : vector<8x128xi32>
    %25 = vector.shape_cast %21 : vector<8x1xf32> to vector<8x1xf32>
    %26 = vector.broadcast %25 : vector<8x1xf32> to vector<8x128xf32>
    %27 = arith.select %24, %13, %26 : vector<8x128xi1>, vector<8x128xf32>
    %c0_15 = arith.constant 0 : index
    %c0_16 = arith.constant 0 : index
    %28 = vector.load %arg8[%c0_15, %c0_16] : memref<8x128xf32, #tpu.memory_space<vmem>>, vector<8x128xf32>
    tpu.vector_store %arg8[%c0_15, %c0_16], %27 {strides = array<i32>} : memref<8x128xf32, #tpu.memory_space<vmem>>, vector<8x128xf32>,
    return
  }
  func.func @transform_0(%arg0: i32) -> (i32, i32) {
    %c0_i32 = arith.constant 0 : i32
    %c0_i32_0 = arith.constant 0 : i32
    return %arg0, %c0_i32 : i32, i32
  }
  func.func @transform_1(%arg0: i32) -> (i32, i32) {
    %c0_i32 = arith.constant 0 : i32
    %c0_i32_0 = arith.constant 0 : i32
    %c0_i32_1 = arith.constant 0 : i32
    return %c0_i32, %c0_i32_0 : i32, i32
  }
  func.func @transform_2(%arg0: i32) -> (i32, i32) {
    %c0_i32 = arith.constant 0 : i32
    %c0_i32_0 = arith.constant 0 : i32
    %c0_i32_1 = arith.constant 0 : i32
    return %c0_i32, %c0_i32_0 : i32, i32
  }
  func.func @transform_3(%arg0: i32) -> (i32, i32) {
    %c0_i32 = arith.constant 0 : i32
    %c0_i32_0 = arith.constant 0 : i32
    %c0_i32_1 = arith.constant 0 : i32
    return %c0_i32, %c0_i32_0 : i32, i32
  }
  func.func @transform_4(%arg0: i32) -> (i32, i32) {
    %c0_i32 = arith.constant 0 : i32
    %c0_i32_0 = arith.constant 0 : i32
    %c0_i32_1 = arith.constant 0 : i32
    return %c0_i32, %c0_i32_0 : i32, i32
  }
  func.func @transform_5(%arg0: i32) -> (i32, i32) {
    %c0_i32 = arith.constant 0 : i32
    %c0_i32_0 = arith.constant 0 : i32
    %c0_i32_1 = arith.constant 0 : i32
    return %c0_i32, %c0_i32_0 : i32, i32
  }
  func.func @transform_6(%arg0: i32) -> (i32, i32) {
    %c0_i32 = arith.constant 0 : i32
    %c0_i32_0 = arith.constant 0 : i32
    %c0_i32_1 = arith.constant 0 : i32
    return %c0_i32, %c0_i32_0 : i32, i32
  }
  func.func @transform_7(%arg0: i32) -> (i32, i32) {
    %c0_i32 = arith.constant 0 : i32
    %c0_i32_0 = arith.constant 0 : i32
    return %arg0, %c0_i32 : i32, i32
  }
}

</mosaic_0001>

<llo_original>
// kernel: mlp_policy_forward.1
$region0: #{mlp_policy_forward.1}
  #allocation0 [shape = 'u32[]', space=smem, size = 0x4, offset = 0x4, fixed_abs, tag = 'smem constant byte address 0x4 - core index']
  #allocation1 [shape = 'u32[144,128]{1,0:T(1,128)}', space=vmem, size = 0x12000, scoped, tag = 'internal scratch']
  #allocation2 [shape = 'f32[1,1]{1,0:T(1,128)S(6)}', space=smem, size = 0x200, scoped, tag = 'scoped memory for mlp_policy_forward.1']
  %s0 = inlined_call_operand.vmem [shape: bf16[8,16], index: 0, kind: input, shape index: {}]
  %s1 = inlined_call_operand.vmem [shape: bf16[16,128], index: 1, kind: input, shape index: {}]
  %s2 = inlined_call_operand.vmem [shape: f32[1,128], index: 2, kind: input, shape index: {}]
  %s3 = inlined_call_operand.hbm [shape: bf16[128,128], index: 3, kind: input, shape index: {}]
  %s4 = inlined_call_operand.vmem [shape: f32[1,128], index: 4, kind: input, shape index: {}]
  %s5 = inlined_call_operand.vmem [shape: f32[1,128], index: 5, kind: input, shape index: {}]
  %s6 = inlined_call_operand.<no memory space> [shape: f32[1,1], index: 6, kind: input, shape index: {}]
  %s7 = inlined_call_operand.vmem [shape: f32[8,128], index: 7, kind: output, shape index: {}]
  %s8 = sld [smem:[#allocation0]]
  $region42: #{mlp_policy_forward.1} parent=0
    _
  %s10 = ssub.s32 1, %s8
  %s11 = scalar_select 0, %s10, %s8
  %12 = sst [smem:[#allocation2]] %s6
  $region1: #{mlp_policy_forward.1} parent=0
    #allocation3 [shape = 'u8[32768]{0}', space=vmem, size = 0x8000, scoped, tag = 'input window, operand 3, single buffered']
    #allocation4 [shape = 's32[1]{0}', space=sflag, size = 0x4, scoped, tag = 'scoped memory for mlp_policy_forward.1']
    %13 = vsyncpa [#allocation4], 0
    // Predicated region
    $region2: #{mlp_policy_forward.1} parent=1 // pred_check
      _
    $region3: #{mlp_policy_forward.1} parent=1 // pred_check_branch
      %15 = sbr.rel (0) target = $region5
    $region4: #{mlp_policy_forward.1} parent=1 // pred_region
      _
    $region5: #{mlp_policy_forward.1} parent=1 // pred_fallthru
      _
    // Predicated region
    $region6: #{mlp_policy_forward.1} parent=1 // pred_check
      _
    $region7: #{mlp_policy_forward.1} parent=1 // pred_check_branch
      %17 = sbr.rel (0) target = $region9
    $region8: #{mlp_policy_forward.1} parent=1 // pred_region
      _
    $region9: #{mlp_policy_forward.1} parent=1 // pred_fallthru
      _
    // Predicated region
    $region10: #{mlp_policy_forward.1} parent=1 // pred_check
      _
    $region11: #{mlp_policy_forward.1} parent=1 // pred_check_branch
      %19 = sbr.rel (0) target = $region13
    $region12: #{mlp_policy_forward.1} parent=1 // pred_region
      _
    $region13: #{mlp_policy_forward.1} parent=1 // pred_fallthru
      _
    // Predicated region
    $region14: #{mlp_policy_forward.1} parent=1 // pred_check
      _
    $region15: #{mlp_policy_forward.1} parent=1 // pred_check_branch
      %21 = sbr.rel (0) target = $region17
    $region16: #{mlp_policy_forward.1} parent=1 // pred_region
      %s23 = ssub.s32 1024, 1024
      %24 = vsyncadd [#allocation4], %s23
      %s25 = sshll.u32 [#allocation3], 4
      %s26 = int_to_ptr.vmem [resolvable:$true] %s25
      %31 = dma.hbm_to_vmem [thread:$0]  %s3, 1024, %s26, [#allocation4], 64, 64, 4
    $region17: #{mlp_policy_forward.1} parent=1 // pred_fallthru
      _
    // Predicated region
    $region18: #{mlp_policy_forward.1} parent=1 // pred_check
      _
    $region19: #{mlp_policy_forward.1} parent=1 // pred_check_branch
      %33 = sbr.rel (0) target = $region21
    $region20: #{mlp_policy_forward.1} parent=1 // pred_region
      _
    $region21: #{mlp_policy_forward.1} parent=1 // pred_fallthru
      _
    // Predicated region
    $region22: #{mlp_policy_forward.1} parent=1 // pred_check
      _
    $region23: #{mlp_policy_forward.1} parent=1 // pred_check_branch
      %35 = sbr.rel (0) target = $region25
    $region24: #{mlp_policy_forward.1} parent=1 // pred_region
      _
    $region25: #{mlp_policy_forward.1} parent=1 // pred_fallthru
      _
    // Predicated region
    $region26: #{mlp_policy_forward.1} parent=1 // pred_check
      _
    $region27: #{mlp_policy_forward.1} parent=1 // pred_check_branch
      %37 = sbr.rel (0) target = $region29
    $region28: #{mlp_policy_forward.1} parent=1 // pred_region
      _
    $region29: #{mlp_policy_forward.1} parent=1 // pred_fallthru
      _
    // Predicated region
    $region30: #{mlp_policy_forward.1} parent=1 // pred_check
      _
    $region31: #{mlp_policy_forward.1} parent=1 // pred_check_branch
      %39 = sbr.rel (0) target = $region33
    $region32: #{mlp_policy_forward.1} parent=1 // pred_region
      %40 = dma.done [#allocation4], 1024
    $region33: #{mlp_policy_forward.1} parent=1 // pred_fallthru
      _
    %v42 = vld [vmem:[%s0] sm:$0xf]
    %v43 = vld [vmem:[%s1] sm:$0xf]
    %v44 = vld [vmem:[%s1 + $0x4] sm:$0xf]
    %v45 = vld [vmem:[%s2] sm:$0x1]
    %v47 = vlaneseq
    %v48 = vshrl.u32 %v47, 7
    %v49 = vsub.s32 0, %v48
    %v50 = vrot.slane %v45, %v49
    %v54 = vunpack.c.l.b16 %v43
    %v55 = vunpack.c.l.b16 %v44
    %v56 = vpack.c.b16 %v55, %v54
    %vm58 = vcmask 130048
    %v60 = vsel %vm58, %v42, 0
    %62 = vmatprep.subr.bf16.mxu0 0
    %63 = vmatpush1.bf16.msra.mxu0 0
    %64 = vmatprep.subr.bf16.mxu0 0
    %65 = vmatpush1.bf16.msra.mxu0 0
    %66 = vmatprep.subr.bf16.mxu0 0
    %67 = vmatpush1.bf16.msra.mxu0 0
    %68 = vmatprep.subr.bf16.mxu0 0
    %69 = vmatpush1.bf16.msra.mxu0 0
    %70 = vmatprep.subr.bf16.mxu0 0
    %71 = vmatpush1.bf16.msra.mxu0 0
    %72 = vmatprep.subr.bf16.mxu0 0
    %73 = vmatpush1.bf16.msra.mxu0 0
    %74 = vmatprep.subr.bf16.mxu0 0
    %75 = vmatpush1.bf16.msra.mxu0 0
    %76 = vmatprep.subr.bf16.mxu0 0
    %77 = vmatpush1.bf16.msra.mxu0 %v56
    %78 = vmatprep.subr.bf16.mxu0 0
    %79 = vmatpush2.bf16.msra.mxu0 0
    %80 = vmatprep.subr.bf16.mxu0 0
    %81 = vmatpush2.bf16.msra.mxu0 0
    %82 = vmatprep.subr.bf16.mxu0 0
    %83 = vmatpush2.bf16.msra.mxu0 0
    %84 = vmatprep.subr.bf16.mxu0 0
    %85 = vmatpush2.bf16.msra.mxu0 0
    %86 = vmatprep.subr.bf16.mxu0 0
    %87 = vmatpush2.bf16.msra.mxu0 0
    %88 = vmatprep.subr.bf16.mxu0 0
    %89 = vmatpush2.bf16.msra.mxu0 0
    %90 = vmatprep.subr.bf16.mxu0 0
    %91 = vmatpush2.bf16.msra.mxu0 0
    %92 = vmatprep.subr.bf16.mxu0 0
    %93 = vmatpush2.bf16.msra.mxu0 0
    %94 = vmatprep.mubr.bf16.mxu0 0
    %95 = vmatmul.mubr.bf16.gmra.mxu0 %v60
    %v96 = vpop.f32.mrf.mxu0
    %v97 = vadd.f32 %v50, %v96
    %v98 = vpop.f32.mrf.mxu0
    %v99 = vpop.f32.mrf.mxu0
    %v100 = vpop.f32.mrf.mxu0
    %101 = vdwg.mxu0
    %v102 = vtanh.pop %v97
    %v103 = vpack.c.bf16 %v102, %v102
    %v104 = vld [vmem:[#allocation3] sm:$0xf]
    %v105 = vld [vmem:[#allocation3 + $0x4] sm:$0xf]
    %v106 = vld [vmem:[#allocation3 + $0x8] sm:$0xf]
    %v107 = vld [vmem:[#allocation3 + $0xc] sm:$0xf]
    %v108 = vld [vmem:[#allocation3 + $0x10] sm:$0xf]
    %v109 = vld [vmem:[#allocation3 + $0x14] sm:$0xf]
    %v110 = vld [vmem:[#allocation3 + $0x18] sm:$0xf]
    %v111 = vld [vmem:[#allocation3 + $0x1c] sm:$0xf]
    %v112 = vld [vmem:[#allocation3 + $0x20] sm:$0xf]
    %v113 = vld [vmem:[#allocation3 + $0x24] sm:$0xf]
    %v114 = vld [vmem:[#allocation3 + $0x28] sm:$0xf]
    %v115 = vld [vmem:[#allocation3 + $0x2c] sm:$0xf]
    %v116 = vld [vmem:[#allocation3 + $0x30] sm:$0xf]
    %v117 = vld [vmem:[#allocation3 + $0x34] sm:$0xf]
    %v118 = vld [vmem:[#allocation3 + $0x38] sm:$0xf]
    %v119 = vld [vmem:[#allocation3 + $0x3c] sm:$0xf]
    %v120 = vld [vmem:[%s4] sm:$0x1]
    %v122 = vlaneseq
    %v123 = vshrl.u32 %v122, 7
    %v124 = vsub.s32 0, %v123
    %v125 = vrot.slane %v120, %v124
    %v143 = vunpack.c.l.b16 %v104
    %v144 = vunpack.c.l.b16 %v105
    %v145 = vunpack.c.l.b16 %v106
    %v146 = vunpack.c.l.b16 %v107
    %v147 = vunpack.c.l.b16 %v108
    %v148 = vunpack.c.l.b16 %v109
    %v149 = vunpack.c.l.b16 %v110
    %v150 = vunpack.c.l.b16 %v111
    %v151 = vunpack.c.l.b16 %v112
    %v152 = vunpack.c.l.b16 %v113
    %v153 = vunpack.c.l.b16 %v114
    %v154 = vunpack.c.l.b16 %v115
    %v155 = vunpack.c.l.b16 %v116
    %v156 = vunpack.c.l.b16 %v117
    %v157 = vunpack.c.l.b16 %v118
    %v158 = vunpack.c.l.b16 %v119
    %v159 = vpack.c.b16 %v144, %v143
    %v160 = vpack.c.b16 %v146, %v145
    %v161 = vpack.c.b16 %v148, %v147
    %v162 = vpack.c.b16 %v150, %v149
    %v163 = vpack.c.b16 %v152, %v151
    %v164 = vpack.c.b16 %v154, %v153
    %v165 = vpack.c.b16 %v156, %v155
    %v166 = vpack.c.b16 %v158, %v157
    %175 = vmatprep.subr.bf16.mxu0 0
    %176 = vmatpush1.bf16.msra.mxu0 %v166
    %177 = vmatprep.subr.bf16.mxu0 0
    %178 = vmatpush1.bf16.msra.mxu0 %v165
    %179 = vmatprep.subr.bf16.mxu0 0
    %180 = vmatpush1.bf16.msra.mxu0 %v164
    %181 = vmatprep.subr.bf16.mxu0 0
    %182 = vmatpush1.bf16.msra.mxu0 %v163
    %183 = vmatprep.subr.bf16.mxu0 0
    %184 = vmatpush1.bf16.msra.mxu0 %v162
    %185 = vmatprep.subr.bf16.mxu0 0
    %186 = vmatpush1.bf16.msra.mxu0 %v161
    %187 = vmatprep.subr.bf16.mxu0 0
    %188 = vmatpush1.bf16.msra.mxu0 %v160
    %189 = vmatprep.subr.bf16.mxu0 0
    %190 = vmatpush1.bf16.msra.mxu0 %v159
    %191 = vmatprep.subr.bf16.mxu0 0
    %192 = vmatpush2.bf16.msra.mxu0 0
    %193 = vmatprep.subr.bf16.mxu0 0
    %194 = vmatpush2.bf16.msra.mxu0 0
    %195 = vmatprep.subr.bf16.mxu0 0
    %196 = vmatpush2.bf16.msra.mxu0 0
    %197 = vmatprep.subr.bf16.mxu0 0
    %198 = vmatpush2.bf16.msra.mxu0 0
    %199 = vmatprep.subr.bf16.mxu0 0
    %200 = vmatpush2.bf16.msra.mxu0 0
    %201 = vmatprep.subr.bf16.mxu0 0
    %202 = vmatpush2.bf16.msra.mxu0 0
    %203 = vmatprep.subr.bf16.mxu0 0
    %204 = vmatpush2.bf16.msra.mxu0 0
    %205 = vmatprep.subr.bf16.mxu0 0
    %206 = vmatpush2.bf16.msra.mxu0 0
    %207 = vmatprep.mubr.bf16.mxu0 0
    %208 = vmatmul.mubr.bf16.gmra.mxu0 %v103
    %v209 = vpop.f32.mrf.mxu0
    %v210 = vadd.f32 %v125, %v209
    %v211 = vpop.f32.mrf.mxu0
    %v212 = vpop.f32.mrf.mxu0
    %v213 = vpop.f32.mrf.mxu0
    %214 = vdwg.mxu0
    %v215 = vtanh.pop %v210
    %v216 = vld [vmem:[%s5] sm:$0x1]
    %v218 = vlaneseq
    %v219 = vshrl.u32 %v218, 7
    %v220 = vsub.s32 0, %v219
    %v221 = vrot.slane %v216, %v220
    %v223 = vmul.f32 %v215, %v221
    %224 = vadd.xlane.f32.xlu0 %v223
    %v225 = vpop.xlane.xlu0 %224
    %s226 = sld [smem:[#allocation2]]
    %v227 = vstv %s226
    %v228 = vadd.f32 %v225, %v227
    %v229 = vlaneseq
    %v230 = vand.u32 %v229, 127
    %vm231 = vcmp.lt.s32.totalorder %v230, 64
    %v232 = vsel %vm231, %v215, %v228
    %233 = vst [vmem:[%s7] sm:$0xff] %v232
    // Predicated region
    $region34: #{mlp_policy_forward.1} parent=1 // pred_check
      _
    $region35: #{mlp_policy_forward.1} parent=1 // pred_check_branch
      %235 = sbr.rel (0) target = $region37
    $region36: #{mlp_policy_forward.1} parent=1 // pred_region
      _
    $region37: #{mlp_policy_forward.1} parent=1 // pred_fallthru
      _
    // Predicated region
    $region38: #{mlp_policy_forward.1} parent=1 // pred_check
      _
    $region39: #{mlp_policy_forward.1} parent=1 // pred_check_branch
      %237 = sbr.rel (0) target = $region41
    $region40: #{mlp_policy_forward.1} parent=1 // pred_region
      _
    $region41: #{mlp_policy_forward.1} parent=1 // pred_fallthru
      _
    %238 = vsyncpa [#allocation4], 1

</llo_original>
